<compile_context>
chip_gen: v6e
topology: v6e:2x2x1
jax: 0.10.0
libtpu: 0.0.40
codegen_flags: <defaults>
</compile_context>

<pallas_src>
import jax
import jax.numpy as jnp
from jax.experimental import pallas as pl
from jax.experimental.pallas import tpu as pltpu


# ----------------------------- glue (plain JAX) -----------------------------

def axis_angle_to_matrix(axis_angle):
    """Rodrigues formula, matches pytorch3d.axis_angle_to_matrix. axis_angle: (1,3)."""
    aa = axis_angle.reshape(3).astype(jnp.float32)
    theta2 = jnp.sum(aa * aa)
    small = theta2 < 1e-12
    safe_theta2 = jnp.where(small, 1.0, theta2)      # grad-safe sqrt at theta ~ 0
    theta = jnp.sqrt(safe_theta2)
    a = jnp.where(small, 1.0 - theta2 / 6.0, jnp.sin(theta) / theta)
    b = jnp.where(small, 0.5 - theta2 / 24.0, (1.0 - jnp.cos(theta)) / safe_theta2)
    kx, ky, kz = aa[0], aa[1], aa[2]
    K = jnp.array([[0.0, -kz, ky],
                   [kz, 0.0, -kx],
                   [-ky, kx, 0.0]], dtype=jnp.float32)
    I = jnp.eye(3, dtype=jnp.float32)
    return I + a * K + b * (K @ K)   # (3, 3)


def _round_up(x, m):
    return ((x + m - 1) // m) * m


# ------------------------------ Pallas kernel -------------------------------

def ghd_kernel(wT_ref, aT_ref, outT_ref):
    # wT_ref:  (3, K)   fused weight  [coeff @ sR^T ; sR^T ; T]^T   (resident)
    # aT_ref:  (K, tv)  transposed augmented basis tile [eigvec | base | 1]^T
    # outT_ref:(3, tv)  lane-dense transformed vertex tile
    outT_ref[...] = jnp.dot(
        wT_ref[...], aT_ref[...],
        preferred_element_type=jnp.float32,
    ).astype(outT_ref.dtype)


def ghd_forward(eigvec, base_verts, coeff, R_axis_angle, s, T, *,
                tv=1024, basis_dtype=jnp.float32):
    """Fused Graph_Harmonic_Deform.forward. Returns verts_padded (1, V, 3)."""
    V, B = eigvec.shape
    K = B + 4

    # ---- tiny per-call weight fusion (3x3 / (B,3) math, plain JAX glue) ----
    R_matrix = axis_angle_to_matrix(R_axis_angle)                  # (3, 3)
    sRt = (R_matrix.T * s.reshape(())).astype(jnp.float32)         # s * R^T
    W = jnp.concatenate(
        [coeff.astype(jnp.float32) @ sRt,                          # (B, 3)
         sRt,                                                      # (3, 3)
         T.reshape(1, 3).astype(jnp.float32)],                     # (1, 3)
        axis=0)                                                    # (K, 3)
    W_T = W.T.astype(basis_dtype)                                  # (3, K)

    # ---- tile sizing: lane-aligned, big tiles, >=2 parallel steps if we can --
    V128 = _round_up(V, 128)
    tv = min(tv, V128)
    if V128 // tv < 2 and V128 >= 256:     # v7x has 2 TensorCores: keep both busy
        tv = max(128, (V128 // 2) // 128 * 128)
    V_pad = _round_up(V128, tv)

    # ---- static augmented basis, transposed & zero-padded to V_pad ---------
    # (In real use eigvec/base_verts are constants -> this is one-time setup.)
    A = jnp.concatenate(
        [eigvec.astype(jnp.float32),
         base_verts.astype(jnp.float32),
         jnp.ones((V, 1), jnp.float32)], axis=1)                   # (V, K)
    A_T = jnp.zeros((K, V_pad), basis_dtype).at[:, :V].set(A.T.astype(basis_dtype))

    out_T = pl.pallas_call(
        ghd_kernel,
        out_shape=jax.ShapeDtypeStruct((3, V_pad), jnp.float32),
        grid=(V_pad // tv,),
        in_specs=[
            pl.BlockSpec((3, K), lambda i: (0, 0)),     # fused weight, resident
            pl.BlockSpec((K, tv), lambda i: (0, i)),    # streamed basis tile
        ],
        out_specs=pl.BlockSpec((3, tv), lambda i: (0, i)),
        compiler_params=pltpu.CompilerParams(
            dimension_semantics=("parallel",)),
    )(W_T, A_T)

    # layout plumbing back to verts_padded convention
    return out_T[:, :V].T[None, :, :]                              # (1, V, 3)


# --------------------------------- reference ---------------------------------

def ghd_forward_ref(eigvec, base_verts, coeff, R_axis_angle, s, T):
    R_matrix = axis_angle_to_matrix(R_axis_angle)
    verts = base_verts + eigvec @ coeff
    out = (verts @ R_matrix.T) * s.reshape(()) + T.reshape(1, 3)
    return out[None, :, :].astype(jnp.float32)


# ----------------------------------- main ------------------------------------

if __name__ == "__main__":
    key = jax.random.PRNGKey(0)
    k1, k2, k3, k4, k5 = jax.random.split(key, 5)

    V = 256                      # number of mesh vertices (small synthetic mesh)
    num_Basis = 6 * 6 + 1        # 37, as in the module __init__

    # Synthetic stand-ins for the laplacian eigen-basis and base mesh vertices.
    # TODO(synk): cot/norm/standard laplacian construction (mix_laplacian) and
    #             scipy eigsh are host-side sparse preprocessing with no Pallas
    #             equivalent; they only produce the static GBH_eigvec used here.
    GBH_eigvec = jax.random.normal(k1, (V, num_Basis), dtype=jnp.float32) * 0.1
    base_verts = jax.random.normal(k2, (V, 3), dtype=jnp.float32)

    # Parameters (module inits to zeros/ones; use non-trivial values so the
    # rotation / scale / translate path is exercised).
    deformation_param = jax.random.normal(k3, (num_Basis, 3), dtype=jnp.float32) * 0.05
    R = jax.random.normal(k4, (1, 3), dtype=jnp.float32) * 0.3   # axis-angle
    s = jnp.array([[1.1]], dtype=jnp.float32)
    T = jax.random.normal(k5, (1, 3), dtype=jnp.float32) * 0.2

    ref = ghd_forward_ref(GBH_eigvec, base_verts, deformation_param, R, s, T)

    # f32 basis path
    out = ghd_forward(GBH_eigvec, base_verts, deformation_param, R, s, T)
    out = jax.block_until_ready(out)
    assert out.shape == (1, V, 3)
    assert jnp.allclose(out, ref, atol=1e-4, rtol=1e-4), "f32 mismatch vs reference"

    # bf16-stored basis path (halves HBM traffic for the eigenbasis stream)
    out_bf16 = ghd_forward(GBH_eigvec, base_verts, deformation_param, R, s, T,
                           basis_dtype=jnp.bfloat16)
    out_bf16 = jax.block_until_ready(out_bf16)
    assert jnp.allclose(out_bf16, ref, atol=1e-1, rtol=2e-2), "bf16 mismatch vs reference"

    print("KERNEL_OK")
</pallas_src>

<mosaic_0001>
module attributes {stable_mosaic.version = 11 : i64} {
  func.func @ghd_kernel(%arg0: i32, %arg1: memref<3x41xf32, #tpu.memory_space<vmem>>, %arg2: memref<41x128xf32, #tpu.memory_space<vmem>>, %arg3: memref<3x128xf32, #tpu.memory_space<vmem>>) attributes {dimension_semantics = [#tpu.dimension_semantics<parallel>], iteration_bounds = array<i64: 2>, scalar_prefetch = 0 : i64, scratch_operands = 0 : i64, tpu.core_type = #tpu.core_type<tc>, window_params = [{pipeline_mode = #tpu.pipeline_mode<synchronous>, transform_indices = @transform_0, window_bounds = array<i64: 3, 41>}, {transform_indices = @transform_1, window_bounds = array<i64: 41, 128>}, {transform_indices = @transform_2, window_bounds = array<i64: 3, 128>}]} {
    %c0 = arith.constant 0 : index
    %c0_0 = arith.constant 0 : index
    %0 = vector.load %arg1[%c0, %c0_0] : memref<3x41xf32, #tpu.memory_space<vmem>>, vector<3x41xf32>
    %c0_1 = arith.constant 0 : index
    %c0_2 = arith.constant 0 : index
    %1 = vector.load %arg2[%c0_1, %c0_2] : memref<41x128xf32, #tpu.memory_space<vmem>>, vector<41x128xf32>
    %cst = arith.constant dense<0.000000e+00> : vector<3x128xf32>
    %2 = tpu.matmul %0, %1, %cst {dimension_numbers = #tpu.dot_dimension_numbers<[1], [0], [0], [1], [0, 0, 1, 1], [], []>} : vector<3x41xf32>, vector<41x128xf32>, vector<3x128xf32> -> vector<3x128xf32>
    %c0_3 = arith.constant 0 : index
    %c0_4 = arith.constant 0 : index
    %3 = vector.load %arg3[%c0_3, %c0_4] : memref<3x128xf32, #tpu.memory_space<vmem>>, vector<3x128xf32>
    tpu.vector_store %arg3[%c0_3, %c0_4], %2 {strides = array<i32>} : memref<3x128xf32, #tpu.memory_space<vmem>>, vector<3x128xf32>,
    return
  }
  func.func @transform_0(%arg0: i32) -> (i32, i32) {
    %c0_i32 = arith.constant 0 : i32
    %c0_i32_0 = arith.constant 0 : i32
    %c0_i32_1 = arith.constant 0 : i32
    return %c0_i32, %c0_i32_0 : i32, i32
  }
  func.func @transform_1(%arg0: i32) -> (i32, i32) {
    %c0_i32 = arith.constant 0 : i32
    %c0_i32_0 = arith.constant 0 : i32
    return %c0_i32, %arg0 : i32, i32
  }
  func.func @transform_2(%arg0: i32) -> (i32, i32) {
    %c0_i32 = arith.constant 0 : i32
    %c0_i32_0 = arith.constant 0 : i32
    return %c0_i32, %arg0 : i32, i32
  }
}

</mosaic_0001>

<llo_original>
// kernel: tpu_custom_call.1
$region0: #{tpu_custom_call.1}
  #allocation0 [shape = 'u32[]', space=smem, size = 0x4, offset = 0x4, fixed_abs, tag = 'smem constant byte address 0x4 - core index']
  #allocation1 [shape = 'u32[144,128]{1,0:T(1,128)}', space=vmem, size = 0x12000, scoped, tag = 'internal scratch']
  %s0 = inlined_call_operand.hbm [shape: f32[3,41], index: 0, kind: input, shape index: {}]
  %s1 = inlined_call_operand.hbm [shape: f32[41,256], index: 1, kind: input, shape index: {}]
  %s2 = inlined_call_operand.hbm [shape: f32[3,256], index: 2, kind: output, shape index: {}]
  %s3 = sld [smem:[#allocation0]]
  $region49: #{tpu_custom_call.1} parent=0
    _
  %s5 = ssub.s32 1, %s3
  %s6 = scalar_select 0, %s5, %s3
  $region1: #{tpu_custom_call.1} parent=0
    #allocation2 [shape = 'u8[2048]{0}', space=vmem, size = 0x800, scoped, tag = 'input window, operand 0, single buffered']
    #allocation3 [shape = 's32[2]{0}', space=sflag, size = 0x8, scoped, tag = 'scoped memory for tpu_custom_call.1']
    #allocation4 [shape = 's32[2]{0}', space=sflag, size = 0x8, scoped, tag = 'scoped memory for tpu_custom_call.1']
    #allocation5 [shape = 'u8[49152]{0}', space=vmem, size = 0xc000, scoped, tag = 'input window, operand 1']
    #allocation6 [shape = 's32[2]{0}', space=sflag, size = 0x8, scoped, tag = 'scoped memory for tpu_custom_call.1']
    #allocation7 [shape = 'u8[4096]{0}', space=vmem, size = 0x1000, scoped, tag = 'output window, operand 0']
    %7 = vsyncpa [#allocation3], 0
    %8 = vsyncpa [#allocation6], 0
    %s9 = scalar_lea.sflag [#allocation6], 1
    %10 = vsyncpa %s9, 0
    %11 = vsyncpa [#allocation4], 0
    %s12 = scalar_lea.sflag [#allocation4], 1
    %13 = vsyncpa %s12, 0
    loop: start=0, step=1, limit=4
    $region2: #{tpu_custom_call.1} parent=1 // loop_pre_header
      _
    $region3: #{tpu_custom_call.1} parent=1 // loop_header
      %s15 = sphi 0, %s19
      %p16 = scmp.ge.s32.totalorder %s15, 4
      %s23 = sphi 0, %s23
      %s25 = sphi 0, %s23
      %s26 = sphi 0, %s25
      %s40 = sphi 0, %s26
      %s46 = sphi 0, %s48
      %s49 = sphi 0, %s46
      %s50 = sphi 0, %s49
      %s66 = sphi 0, %s50
      %s72 = sphi 0, %s74
      %s75 = sphi 0, %s72
      %s76 = sphi 0, %s75
      %s92 = sphi 0, %s76
    $region4: #{tpu_custom_call.1} parent=1 // loop_header_branch
      %18 = sbr.rel (%p16) target = $region8
    $region5: #{tpu_custom_call.1} parent=1 // loop_body
      %s20 = ssub.s32 %s15, 1
      %s21 = ssub.s32 %s15, 2
      %s22 = sadd.s32 %s15, 1
      %s24 = sadd.s32 %s23, 1
      %p27 = scmp.eq.s32.totalorder %s15, 1
      %p28 = scmp.ne.s32.totalorder %s23, %s25
      %p29 = scmp.eq.s32.totalorder %s15, 0
      %p30 = por %p28, %p29
      %p31 = scmp.ne.s32.totalorder %s23, %s25
      %p32 = scmp.eq.s32.totalorder %s20, 1
      %p33 = por %p31, %p32
      %p34 = scmp.ne.s32.totalorder %s25, %s26
      %p35 = scmp.eq.s32.totalorder %s20, 0
      %p36 = por %p34, %p35
      %p37 = scmp.ne.s32.totalorder %s25, %s26
      %p38 = scmp.eq.s32.totalorder %s21, 1
      %p39 = por %p37, %p38
      %p41 = scmp.ne.s32.totalorder %s26, %s40
      %p42 = scmp.eq.s32.totalorder %s21, 0
      %p43 = por %p41, %p42
      %s44 = ssub.s32 %s15, %s22
      %p45 = scmp.eq.s32.totalorder %s44, 0
      %s47 = sadd.s32 %s46, 1
      %s48 = scalar_select %p45, %s46, %s47
      %p51 = pneg %p45
      %p52 = scmp.eq.s32.totalorder %s15, 1
      %p53 = por %p51, %p52
      %p54 = scmp.ne.s32.totalorder %s46, %s49
      %p55 = scmp.eq.s32.totalorder %s15, 0
      %p56 = por %p54, %p55
      %p57 = scmp.ne.s32.totalorder %s46, %s49
      %p58 = scmp.eq.s32.totalorder %s20, 1
      %p59 = por %p57, %p58
      %p60 = scmp.ne.s32.totalorder %s49, %s50
      %p61 = scmp.eq.s32.totalorder %s20, 0
      %p62 = por %p60, %p61
      %p63 = scmp.ne.s32.totalorder %s49, %s50
      %p64 = scmp.eq.s32.totalorder %s21, 1
      %p65 = por %p63, %p64
      %p67 = scmp.ne.s32.totalorder %s50, %s66
      %p68 = scmp.eq.s32.totalorder %s21, 0
      %p69 = por %p67, %p68
      %s70 = ssub.s32 %s15, %s22
      %p71 = scmp.eq.s32.totalorder %s70, 0
      %s73 = sadd.s32 %s72, 1
      %s74 = scalar_select %p71, %s72, %s73
      %p77 = pneg %p71
      %p78 = scmp.eq.s32.totalorder %s15, 1
      %p79 = por %p77, %p78
      %p80 = scmp.ne.s32.totalorder %s72, %s75
      %p81 = scmp.eq.s32.totalorder %s15, 0
      %p82 = por %p80, %p81
      %p83 = scmp.ne.s32.totalorder %s72, %s75
      %p84 = scmp.eq.s32.totalorder %s20, 1
      %p85 = por %p83, %p84
      %p86 = scmp.ne.s32.totalorder %s75, %s76
      %p87 = scmp.eq.s32.totalorder %s20, 0
      %p88 = por %p86, %p87
      %p89 = scmp.ne.s32.totalorder %s75, %s76
      %p90 = scmp.eq.s32.totalorder %s21, 1
      %p91 = por %p89, %p90
      %p93 = scmp.ne.s32.totalorder %s76, %s92
      %p94 = scmp.eq.s32.totalorder %s21, 0
      %p95 = por %p93, %p94
      %p96 = scmp.le.s32.totalorder 1, %s15
      %p97 = scmp.lt.s32.totalorder %s15, 3
      %p98 = pnand %p96, %p97
      %p99 = pneg %p98
      // Predicated region
      $region9: #{tpu_custom_call.1} parent=5 // pred_check
        _
      $region10: #{tpu_custom_call.1} parent=5 // pred_check_branch
        %101 = sbr.rel (%p98) target = $region12
      $region11: #{tpu_custom_call.1} parent=5 // pred_region
        %s102 = ssub.s32 %s15, 1
        // Predicated region
        $region13: #{tpu_custom_call.1} parent=11 // pred_check
          %p103 = pneg %p36
        $region14: #{tpu_custom_call.1} parent=11 // pred_check_branch
          %105 = sbr.rel (%p103) target = $region16
        $region15: #{tpu_custom_call.1} parent=11 // pred_region
          %s107 = ssub.s32 64, 64
          %108 = vsyncadd [#allocation3], %s107
          %s110 = sshll.u32 [#allocation2], 4
          %s111 = int_to_ptr.vmem [resolvable:$true] %s110
          %113 = dma.hbm_to_vmem [thread:$0]  %s0, 64, %s111, [#allocation3]
        $region16: #{tpu_custom_call.1} parent=11 // pred_fallthru
          _
      $region12: #{tpu_custom_call.1} parent=5 // pred_fallthru
        _
      %p114 = scmp.lt.s32.totalorder %s15, 2
      // Predicated region
      $region17: #{tpu_custom_call.1} parent=5 // pred_check
        %p115 = pneg %p114
      $region18: #{tpu_custom_call.1} parent=5 // pred_check_branch
        %117 = sbr.rel (%p115) target = $region20
      $region19: #{tpu_custom_call.1} parent=5 // pred_region
        // Predicated region
        $region21: #{tpu_custom_call.1} parent=19 // pred_check
          %p118 = pneg %p56
        $region22: #{tpu_custom_call.1} parent=19 // pred_check_branch
          %120 = sbr.rel (%p118) target = $region24
        $region23: #{tpu_custom_call.1} parent=19 // pred_region
          %s121 = sand.u32 %s46, 1
          %s122 = scalar_lea.sflag [#allocation6], %s121
          %s123 = sand.u32 %s46, 1
          %s124 = smul.addr %s123, 48
          %s125 = scalar_lea.vmem [#allocation5], %s124
          %s127 = ssub.s32 768, 768
          %128 = vsyncadd %s122, %s127
          %s129 = smul.addr %s15, 128
          %s130 = scalar_lea.hbm %s1, %s129
          %s131 = sshll.u32 %s125, 4
          %s132 = int_to_ptr.vmem [resolvable:$true] %s131
          %137 = dma.hbm_to_vmem [thread:$0]  %s130, 768, %s132, %s122, 256, 128, 8
        $region24: #{tpu_custom_call.1} parent=19 // pred_fallthru
          _
      $region20: #{tpu_custom_call.1} parent=5 // pred_fallthru
        _
      %p138 = scmp.le.s32.totalorder 1, %s15
      %p139 = scmp.lt.s32.totalorder %s15, 3
      %p140 = pnand %p138, %p139
      %p141 = pneg %p140
      // Predicated region
      $region25: #{tpu_custom_call.1} parent=5 // pred_check
        _
      $region26: #{tpu_custom_call.1} parent=5 // pred_check_branch
        %143 = sbr.rel (%p140) target = $region28
      $region27: #{tpu_custom_call.1} parent=5 // pred_region
        %s144 = ssub.s32 %s15, 1
        // Predicated region
        $region29: #{tpu_custom_call.1} parent=27 // pred_check
          %p145 = pneg %p36
        $region30: #{tpu_custom_call.1} parent=27 // pred_check_branch
          %147 = sbr.rel (%p145) target = $region32
        $region31: #{tpu_custom_call.1} parent=27 // pred_region
          %148 = dma.done [#allocation3], 64
        $region32: #{tpu_custom_call.1} parent=27 // pred_fallthru
          _
        %s149 = sand.u32 %s49, 1
        %s150 = scalar_lea.sflag [#allocation6], %s149
        %s151 = sand.u32 %s49, 1
        %s152 = smul.addr %s151, 48
        %s153 = scalar_lea.vmem [#allocation5], %s152
        // Predicated region
        $region33: #{tpu_custom_call.1} parent=27 // pred_check
          %p154 = pneg %p62
        $region34: #{tpu_custom_call.1} parent=27 // pred_check_branch
          %156 = sbr.rel (%p154) target = $region36
        $region35: #{tpu_custom_call.1} parent=27 // pred_region
          %157 = dma.done %s150, 768
        $region36: #{tpu_custom_call.1} parent=27 // pred_fallthru
          _
        %p158 = pneg %p36
        %p159 = pneg %p33
        %s160 = sand.u32 %s49, 1
        %s161 = scalar_lea.sflag [#allocation6], %s160
        %s162 = sand.u32 %s49, 1
        %s163 = smul.addr %s162, 48
        %s164 = scalar_lea.vmem [#allocation5], %s163
        %p165 = pneg %p62
        %p166 = pneg %p59
        %p167 = pneg %p88
        %p168 = pneg %p85
        %s169 = sand.u32 %s75, 1
        %s170 = scalar_lea.sflag [#allocation4], %s169
        %s171 = sand.u32 %s75, 1
        %s172 = smul.addr %s171, 4
        %s173 = scalar_lea.vmem [#allocation7], %s172
        %v174 = vld [vmem:[#allocation2] sm:$0x7]
        %v175 = vld [vmem:[%s153] sm:$0xff]
        %v176 = vld [vmem:[%s153 + $0x8] sm:$0xff]
        %v177 = vld [vmem:[%s153 + $0x10] sm:$0xff]
        %v178 = vld [vmem:[%s153 + $0x18] sm:$0xff]
        %v179 = vld [vmem:[%s153 + $0x20] sm:$0xff]
        %v180 = vld [vmem:[%s153 + $0x28] sm:$0x1]
        %vm181 = vcmask 334848
        %v183 = vsel %vm181, %v174, 0
        %vm185 = vcmask 1040384
        %v187 = vsel %vm185, %v180, 0
        %189 = vmatprep.subr.mxu0 0.0
        %190 = vmatpush1.msra.mxu0 0.0
        %191 = vmatprep.subr.mxu0 0.0
        %192 = vmatpush1.msra.mxu0 0.0
        %193 = vmatprep.subr.mxu0 0.0
        %194 = vmatpush1.msra.mxu0 0.0
        %195 = vmatprep.subr.mxu0 0.0
        %196 = vmatpush1.msra.mxu0 0.0
        %197 = vmatprep.subr.mxu0 0.0
        %198 = vmatpush1.msra.mxu0 0.0
        %199 = vmatprep.subr.mxu0 0.0
        %200 = vmatpush1.msra.mxu0 0.0
        %201 = vmatprep.subr.mxu0 0.0
        %202 = vmatpush1.msra.mxu0 0.0
        %203 = vmatprep.subr.mxu0 0.0
        %204 = vmatpush1.msra.mxu0 0.0
        %205 = vmatprep.subr.mxu0 0.0
        %206 = vmatpush1.msra.mxu0 0.0
        %207 = vmatprep.subr.mxu0 0.0
        %208 = vmatpush1.msra.mxu0 0.0
        %209 = vmatprep.subr.mxu0 0.0
        %210 = vmatpush1.msra.mxu0 %v187
        %211 = vmatprep.subr.mxu0 0.0
        %212 = vmatpush1.msra.mxu0 %v179
        %213 = vmatprep.subr.mxu0 0.0
        %214 = vmatpush1.msra.mxu0 %v178
        %215 = vmatprep.subr.mxu0 0.0
        %216 = vmatpush1.msra.mxu0 %v177
        %217 = vmatprep.subr.mxu0 0.0
        %218 = vmatpush1.msra.mxu0 %v176
        %219 = vmatprep.subr.mxu0 0.0
        %220 = vmatpush1.msra.mxu0 %v175
        %221 = vmatprep.subr.mxu0 0.0
        %222 = vmatpush2.msra.mxu0 0.0
        %223 = vmatprep.subr.mxu0 0.0
        %224 = vmatpush2.msra.mxu0 0.0
        %225 = vmatprep.subr.mxu0 0.0
        %226 = vmatpush2.msra.mxu0 0.0
        %227 = vmatprep.subr.mxu0 0.0
        %228 = vmatpush2.msra.mxu0 0.0
        %229 = vmatprep.subr.mxu0 0.0
        %230 = vmatpush2.msra.mxu0 0.0
        %231 = vmatprep.subr.mxu0 0.0
        %232 = vmatpush2.msra.mxu0 0.0
        %233 = vmatprep.subr.mxu0 0.0
        %234 = vmatpush2.msra.mxu0 0.0
        %235 = vmatprep.subr.mxu0 0.0
        %236 = vmatpush2.msra.mxu0 0.0
        %237 = vmatprep.subr.mxu0 0.0
        %238 = vmatpush2.msra.mxu0 0.0
        %239 = vmatprep.subr.mxu0 0.0
        %240 = vmatpush2.msra.mxu0 0.0
        %241 = vmatprep.subr.mxu0 0.0
        %242 = vmatpush2.msra.mxu0 0.0
        %243 = vmatprep.subr.mxu0 0.0
        %244 = vmatpush2.msra.mxu0 0.0
        %245 = vmatprep.subr.mxu0 0.0
        %246 = vmatpush2.msra.mxu0 0.0
        %247 = vmatprep.subr.mxu0 0.0
        %248 = vmatpush2.msra.mxu0 0.0
        %249 = vmatprep.subr.mxu0 0.0
        %250 = vmatpush2.msra.mxu0 0.0
        %251 = vmatprep.subr.mxu0 0.0
        %252 = vmatpush2.msra.mxu0 0.0
        %253 = vmatprep.mubr.f32.mxu0 0.0
        %254 = vmatmul.mubr.f32.gmra.mxu0 %v183
        %v255 = vpop.f32.mrf.mxu0
        %v256 = vadd.f32 0.0, %v255
        %v257 = vpop.f32.mrf.mxu0
        %258 = vdwg.mxu0
        %259 = vst [vmem:[%s173] sm:$0x7] %v256
        %s260 = sand.u32 %s75, 1
        %s261 = scalar_lea.sflag [#allocation4], %s260
        %s262 = sand.u32 %s75, 1
        %s263 = smul.addr %s262, 4
        %s264 = scalar_lea.vmem [#allocation7], %s263
        // Predicated region
        $region37: #{tpu_custom_call.1} parent=27 // pred_check
          %p265 = pneg %p85
        $region38: #{tpu_custom_call.1} parent=27 // pred_check_branch
          %267 = sbr.rel (%p265) target = $region40
        $region39: #{tpu_custom_call.1} parent=27 // pred_region
          %s269 = ssub.s32 64, 64
          %270 = vsyncadd %s261, %s269
          %s271 = smul.addr %s20, 64
          %s272 = scalar_lea.hbm %s2, %s271
          %s274 = sshll.u32 %s264, 4
          %s275 = int_to_ptr.vmem [resolvable:$true] %s274
          %277 = dma.vmem_to_hbm [thread:$0]  %s275, 64, %s272, %s261
        $region40: #{tpu_custom_call.1} parent=27 // pred_fallthru
          _
      $region28: #{tpu_custom_call.1} parent=5 // pred_fallthru
        _
      %p278 = scmp.le.s32.totalorder 2, %s15
      // Predicated region
      $region41: #{tpu_custom_call.1} parent=5 // pred_check
        %p279 = pneg %p278
      $region42: #{tpu_custom_call.1} parent=5 // pred_check_branch
        %281 = sbr.rel (%p279) target = $region44
      $region43: #{tpu_custom_call.1} parent=5 // pred_region
        %s282 = ssub.s32 %s15, 2
        // Predicated region
        $region45: #{tpu_custom_call.1} parent=43 // pred_check
          %p283 = pneg %p91
        $region46: #{tpu_custom_call.1} parent=43 // pred_check_branch
          %285 = sbr.rel (%p283) target = $region48
        $region47: #{tpu_custom_call.1} parent=43 // pred_region
          %s286 = sand.u32 %s76, 1
          %s287 = scalar_lea.sflag [#allocation4], %s286
          %s288 = sand.u32 %s76, 1
          %s289 = smul.addr %s288, 4
          %s290 = scalar_lea.vmem [#allocation7], %s289
          %291 = dma.done %s287, 64
        $region48: #{tpu_custom_call.1} parent=43 // pred_fallthru
          _
      $region44: #{tpu_custom_call.1} parent=5 // pred_fallthru
        _
    $region6: #{tpu_custom_call.1} parent=1 // loop_footer
      %s19 = sadd.s32 1, %s15
    $region7: #{tpu_custom_call.1} parent=1 // loop_footer_branch
      %14 = sbr.rel target = $region3
    $region8: #{tpu_custom_call.1} parent=1 // loop_exit
      _
    %292 = vsyncpa [#allocation3], 1
    %s293 = scalar_lea.sflag [#allocation3], 1
    %294 = vsyncpa %s293, 1
    %295 = vsyncpa [#allocation6], 1
    %s296 = scalar_lea.sflag [#allocation6], 1
    %297 = vsyncpa %s296, 1
    %298 = vsyncpa [#allocation4], 1
    %s299 = scalar_lea.sflag [#allocation4], 1
    %300 = vsyncpa %s299, 1

</llo_original>
